<compile_context>
chip_gen: v7x
topology: tpu7x:2x2x1
jax: 0.10.0
libtpu: 0.0.40
codegen_flags: <defaults>
</compile_context>

<pallas_src>
import jax
import jax.numpy as jnp
from jax.experimental import pallas as pl
from jax.experimental.pallas import tpu as pltpu


# --------------------------------------------------------------------------- #
# Kernel
# --------------------------------------------------------------------------- #
def _da_similarity_kernel(l_ref, r_ref, wm_ref, wa_ref, wp_ref, bh_ref, bp_ref,
                          o_ref):
    l = l_ref[...]
    r = r_ref[...]

    # Distance features (VPU, bf16-native on v6e/v7x; v5e upcasts -- cheap).
    mult = l * r
    absd = jnp.abs(l - r)

    # Hidden layer: two K=mem_dim MXU dots against the split halves of Wh.T,
    # f32 accumulate, + bias, sigmoid (EUP).  Avoids any in-kernel lane concat.
    h_pre = (jnp.dot(mult, wm_ref[...], preferred_element_type=jnp.float32)
             + jnp.dot(absd, wa_ref[...], preferred_element_type=jnp.float32)
             + bh_ref[...])
    h = jax.nn.sigmoid(h_pre)

    # Output layer + numerically stable log_softmax along the class axis.
    logits = jnp.dot(h.astype(wp_ref.dtype), wp_ref[...],
                     preferred_element_type=jnp.float32) + bp_ref[...]
    m = jnp.max(logits, axis=-1, keepdims=True)
    z = logits - m
    lse = jnp.log(jnp.sum(jnp.exp(z), axis=-1, keepdims=True))
    o_ref[...] = (z - lse).astype(o_ref.dtype)


# --------------------------------------------------------------------------- #
# One-time (model-load) parameter packing
# --------------------------------------------------------------------------- #
def pack_da_similarity_params(wh_w, wh_b, wp_w, wp_b,
                              param_dtype=jnp.bfloat16):
    """Pack nn.Linear params once (not per call).

    wh_w: (hidden, 2*mem_dim), wh_b: (hidden,)
    wp_w: (num_classes, hidden), wp_b: (num_classes,)

    Wh is split into its 'mult' and 'abs' halves (transposed) so the kernel
    never builds the concatenated feature vector; weights are stored in
    `param_dtype` (bf16 by default) while biases stay f32 (added post-accum).
    """
    hidden, two_mem = wh_w.shape
    mem_dim = two_mem // 2
    assert two_mem == 2 * mem_dim
    w_mult = wh_w[:, :mem_dim].T.astype(param_dtype)      # (mem_dim, hidden)
    w_abs = wh_w[:, mem_dim:].T.astype(param_dtype)       # (mem_dim, hidden)
    wp_t = wp_w.T.astype(param_dtype)                     # (hidden, C)
    bh = wh_b.reshape(1, -1).astype(jnp.float32)          # (1, hidden)
    bp = wp_b.reshape(1, -1).astype(jnp.float32)          # (1, C)
    return w_mult, w_abs, wp_t, bh, bp


# --------------------------------------------------------------------------- #
# Wrapper
# --------------------------------------------------------------------------- #
def _jax_forward(lvec, rvec, packed_params):
    """Plain-XLA path for tiny batches (same math / same packed params)."""
    w_mult, w_abs, wp_t, bh, bp = packed_params
    l = lvec.astype(w_mult.dtype)
    r = rvec.astype(w_mult.dtype)
    h = jax.nn.sigmoid(
        jnp.dot(l * r, w_mult, preferred_element_type=jnp.float32)
        + jnp.dot(jnp.abs(l - r), w_abs, preferred_element_type=jnp.float32)
        + bh)
    logits = jnp.dot(h.astype(wp_t.dtype), wp_t,
                     preferred_element_type=jnp.float32) + bp
    return jax.nn.log_softmax(logits, axis=-1)


def _round_up(x, m):
    return ((x + m - 1) // m) * m


def _pick_batch_tile(B, batch_tile):
    """Batch tile: multiple of 16 (bf16 (16,128) tile), <= batch_tile, and
    >= 2 grid steps whenever the batch is big enough (v7x dual-TC sharding)."""
    if B <= 16:
        return B
    tb = min(_round_up(batch_tile, 16), _round_up(B, 16))
    if pl.cdiv(B, tb) < 2:
        tb = _round_up(pl.cdiv(B, 2), 16)   # ~half batch -> exactly 2 steps
    return tb


def da_similarity(lvec, rvec, packed_params, *, batch_tile=4096,
                  min_pallas_batch=1024, force_pallas=False):
    """lvec, rvec: (B, mem_dim).  packed_params from pack_da_similarity_params.

    batch_tile is exposed for sweeping (2048-8192 is the sensible range; even
    tb=8192 bf16 keeps the double-buffered working set ~2 MiB)."""
    w_mult, w_abs, wp_t, bh, bp = packed_params
    B, mem_dim = lvec.shape
    assert w_mult.shape[0] == mem_dim and w_abs.shape[0] == mem_dim
    hidden_dim = w_mult.shape[1]
    num_classes = wp_t.shape[1]
    assert bh.shape == (1, hidden_dim) and bp.shape == (1, num_classes)

    # Tiny batches: pallas_call launch + per-step overhead dwarfs the math.
    if B < min_pallas_batch and not force_pallas:
        return _jax_forward(lvec, rvec, packed_params)

    compute_dtype = w_mult.dtype
    lvec = lvec.astype(compute_dtype)
    rvec = rvec.astype(compute_dtype)

    tb = _pick_batch_tile(B, batch_tile)
    grid = (pl.cdiv(B, tb),)

    return pl.pallas_call(
        _da_similarity_kernel,
        out_shape=jax.ShapeDtypeStruct((B, num_classes), jnp.float32),
        grid=grid,
        in_specs=[
            pl.BlockSpec((tb, mem_dim), lambda i: (i, 0)),           # lvec tile
            pl.BlockSpec((tb, mem_dim), lambda i: (i, 0)),           # rvec tile
            pl.BlockSpec((mem_dim, hidden_dim), lambda i: (0, 0)),   # Wh.T (mult half), resident
            pl.BlockSpec((mem_dim, hidden_dim), lambda i: (0, 0)),   # Wh.T (abs half),  resident
            pl.BlockSpec((hidden_dim, num_classes), lambda i: (0, 0)),  # Wp.T, resident
            pl.BlockSpec((1, hidden_dim), lambda i: (0, 0)),         # bh
            pl.BlockSpec((1, num_classes), lambda i: (0, 0)),        # bp
        ],
        out_specs=pl.BlockSpec((tb, num_classes), lambda i: (i, 0)),
        compiler_params=pltpu.CompilerParams(
            dimension_semantics=("parallel",)),
    )(lvec, rvec, w_mult, w_abs, wp_t, bh, bp)


# --------------------------------------------------------------------------- #
# Reference (mirrors the PyTorch module in f32)
# --------------------------------------------------------------------------- #
def _reference(lvec, rvec, wh_w, wh_b, wp_w, wp_b):
    mult = lvec * rvec
    absd = jnp.abs(lvec - rvec)
    vec = jnp.concatenate([mult, absd], axis=1)
    h = jax.nn.sigmoid(vec @ wh_w.T + wh_b)
    logits = h @ wp_w.T + wp_b
    return jax.nn.log_softmax(logits, axis=-1)


if __name__ == "__main__":
    # Small shapes consistent with the module: batch=8, mem_dim=32, hidden=32, C=8
    B, mem_dim, hidden_dim, num_classes = 8, 32, 32, 8

    key = jax.random.PRNGKey(0)
    k_l, k_r, k_whw, k_whb, k_wpw, k_wpb, k_l2, k_r2 = jax.random.split(key, 8)

    lvec = jax.random.normal(k_l, (B, mem_dim), dtype=jnp.float32)
    rvec = jax.random.normal(k_r, (B, mem_dim), dtype=jnp.float32)

    # Deterministic synthetic parameters (shapes from nn.Linear in __init__).
    wh_w = jax.random.normal(k_whw, (hidden_dim, 2 * mem_dim), jnp.float32) * 0.1
    wh_b = jax.random.normal(k_whb, (hidden_dim,), jnp.float32) * 0.1
    wp_w = jax.random.normal(k_wpw, (num_classes, hidden_dim), jnp.float32) * 0.1
    wp_b = jax.random.normal(k_wpb, (num_classes,), jnp.float32) * 0.1

    packed = pack_da_similarity_params(wh_w, wh_b, wp_w, wp_b)
    ref = _reference(lvec, rvec, wh_w, wh_b, wp_w, wp_b)

    # 1) Small batch, forced through the Pallas kernel (the default wrapper
    #    would route B=8 to the plain-XLA path).  bf16 inputs -> loose tol.
    out = da_similarity(lvec, rvec, packed, force_pallas=True)
    out = jax.block_until_ready(out)
    assert out.shape == (B, num_classes)
    assert jnp.allclose(out, ref, atol=2e-2, rtol=0.0), "mismatch vs reference (small)"

    # 2) Larger batch via the default path: exercises >=2 grid steps
    #    (v7x dual-TC sharding) and a partial last tile.
    B2 = 2100
    lvec2 = jax.random.normal(k_l2, (B2, mem_dim), dtype=jnp.float32)
    rvec2 = jax.random.normal(k_r2, (B2, mem_dim), dtype=jnp.float32)
    out2 = jax.block_until_ready(da_similarity(lvec2, rvec2, packed))
    ref2 = _reference(lvec2, rvec2, wh_w, wh_b, wp_w, wp_b)
    assert out2.shape == (B2, num_classes)
    assert jnp.allclose(out2, ref2, atol=2e-2, rtol=0.0), "mismatch vs reference (large)"

    print("KERNEL_OK")
</pallas_src>

<mosaic_0001>
module attributes {stable_mosaic.version = 11 : i64} {
  func.func @_da_similarity_kernel(%arg0: i32, %arg1: memref<8x32xbf16, #tpu.memory_space<vmem>>, %arg2: memref<8x32xbf16, #tpu.memory_space<vmem>>, %arg3: memref<32x32xbf16, #tpu.memory_space<vmem>>, %arg4: memref<32x32xbf16, #tpu.memory_space<vmem>>, %arg5: memref<32x8xbf16, #tpu.memory_space<vmem>>, %arg6: memref<1x32xf32, #tpu.memory_space<vmem>>, %arg7: memref<1x8xf32, #tpu.memory_space<vmem>>, %arg8: memref<8x8xf32, #tpu.memory_space<vmem>>) attributes {dimension_semantics = [#tpu.dimension_semantics<parallel>], iteration_bounds = array<i64: 1>, scalar_prefetch = 0 : i64, scratch_operands = 0 : i64, tpu.core_type = #tpu.core_type<tc>, window_params = [{transform_indices = @transform_0, window_bounds = array<i64: 8, 32>}, {transform_indices = @transform_1, window_bounds = array<i64: 8, 32>}, {pipeline_mode = #tpu.pipeline_mode<synchronous>, transform_indices = @transform_2, window_bounds = array<i64: 32, 32>}, {pipeline_mode = #tpu.pipeline_mode<synchronous>, transform_indices = @transform_3, window_bounds = array<i64: 32, 32>}, {pipeline_mode = #tpu.pipeline_mode<synchronous>, transform_indices = @transform_4, window_bounds = array<i64: 32, 8>}, {pipeline_mode = #tpu.pipeline_mode<synchronous>, transform_indices = @transform_5, window_bounds = array<i64: 1, 32>}, {pipeline_mode = #tpu.pipeline_mode<synchronous>, transform_indices = @transform_6, window_bounds = array<i64: 1, 8>}, {transform_indices = @transform_7, window_bounds = array<i64: 8, 8>}]} {
    %c0 = arith.constant 0 : index
    %c0_0 = arith.constant 0 : index
    %0 = vector.load %arg1[%c0, %c0_0] : memref<8x32xbf16, #tpu.memory_space<vmem>>, vector<8x32xbf16>
    %c0_1 = arith.constant 0 : index
    %c0_2 = arith.constant 0 : index
    %1 = vector.load %arg2[%c0_1, %c0_2] : memref<8x32xbf16, #tpu.memory_space<vmem>>, vector<8x32xbf16>
    %2 = arith.mulf %0, %1 : vector<8x32xbf16>
    %3 = arith.subf %0, %1 : vector<8x32xbf16>
    %4 = math.absf %3 : vector<8x32xbf16>
    %c0_3 = arith.constant 0 : index
    %c0_4 = arith.constant 0 : index
    %5 = vector.load %arg3[%c0_3, %c0_4] : memref<32x32xbf16, #tpu.memory_space<vmem>>, vector<32x32xbf16>
    %cst = arith.constant dense<0.000000e+00> : vector<8x32xf32>
    %6 = tpu.matmul %2, %5, %cst {dimension_numbers = #tpu.dot_dimension_numbers<[1], [0], [0], [1], [0, 0, 1, 1], [], []>} : vector<8x32xbf16>, vector<32x32xbf16>, vector<8x32xf32> -> vector<8x32xf32>
    %c0_5 = arith.constant 0 : index
    %c0_6 = arith.constant 0 : index
    %7 = vector.load %arg4[%c0_5, %c0_6] : memref<32x32xbf16, #tpu.memory_space<vmem>>, vector<32x32xbf16>
    %cst_7 = arith.constant dense<0.000000e+00> : vector<8x32xf32>
    %8 = tpu.matmul %4, %7, %cst_7 {dimension_numbers = #tpu.dot_dimension_numbers<[1], [0], [0], [1], [0, 0, 1, 1], [], []>} : vector<8x32xbf16>, vector<32x32xbf16>, vector<8x32xf32> -> vector<8x32xf32>
    %9 = arith.addf %6, %8 : vector<8x32xf32>
    %c0_8 = arith.constant 0 : index
    %c0_9 = arith.constant 0 : index
    %10 = vector.load %arg6[%c0_8, %c0_9] : memref<1x32xf32, #tpu.memory_space<vmem>>, vector<1x32xf32>
    %11 = vector.broadcast %10 : vector<1x32xf32> to vector<8x32xf32>
    %12 = arith.addf %9, %11 : vector<8x32xf32>
    %13 = arith.negf %12 : vector<8x32xf32>
    %14 = math.exp %13 : vector<8x32xf32>
    %cst_10 = arith.constant 1.000000e+00 : f32
    %15 = vector.broadcast %cst_10 : f32 to vector<8x32xf32>
    %16 = arith.addf %15, %14 : vector<8x32xf32>
    %17 = arith.divf %15, %16 : vector<8x32xf32>
    %18 = arith.truncf %17 : vector<8x32xf32> to vector<8x32xbf16>
    %c0_11 = arith.constant 0 : index
    %c0_12 = arith.constant 0 : index
    %19 = vector.load %arg5[%c0_11, %c0_12] : memref<32x8xbf16, #tpu.memory_space<vmem>>, vector<32x8xbf16>
    %cst_13 = arith.constant dense<0.000000e+00> : vector<8x8xf32>
    %20 = tpu.matmul %18, %19, %cst_13 {dimension_numbers = #tpu.dot_dimension_numbers<[1], [0], [0], [1], [0, 0, 1, 1], [], []>} : vector<8x32xbf16>, vector<32x8xbf16>, vector<8x8xf32> -> vector<8x8xf32>
    %c0_14 = arith.constant 0 : index
    %c0_15 = arith.constant 0 : index
    %21 = vector.load %arg7[%c0_14, %c0_15] : memref<1x8xf32, #tpu.memory_space<vmem>>, vector<1x8xf32>
    %22 = vector.broadcast %21 : vector<1x8xf32> to vector<8x8xf32>
    %23 = arith.addf %20, %22 : vector<8x8xf32>
    %cst_16 = arith.constant dense<0xFF800000> : vector<8xf32>
    %24 = vector.multi_reduction <maximumf>, %23, %cst_16 [1] : vector<8x8xf32> to vector<8xf32>
    %25 = vector.shape_cast %24 : vector<8xf32> to vector<8x1xf32>
    %26 = vector.broadcast %25 : vector<8x1xf32> to vector<8x8xf32>
    %27 = arith.subf %23, %26 : vector<8x8xf32>
    %28 = math.exp %27 : vector<8x8xf32>
    %cst_17 = arith.constant dense<0.000000e+00> : vector<8xf32>
    %29 = vector.multi_reduction <add>, %28, %cst_17 [1] : vector<8x8xf32> to vector<8xf32>
    %30 = vector.shape_cast %29 : vector<8xf32> to vector<8x1xf32>
    %31 = math.log %30 : vector<8x1xf32>
    %32 = vector.broadcast %31 : vector<8x1xf32> to vector<8x8xf32>
    %33 = arith.subf %27, %32 : vector<8x8xf32>
    %c0_18 = arith.constant 0 : index
    %c0_19 = arith.constant 0 : index
    %34 = vector.load %arg8[%c0_18, %c0_19] : memref<8x8xf32, #tpu.memory_space<vmem>>, vector<8x8xf32>
    tpu.vector_store %arg8[%c0_18, %c0_19], %33 {strides = array<i32>} : memref<8x8xf32, #tpu.memory_space<vmem>>, vector<8x8xf32>,
    return
  }
  func.func @transform_0(%arg0: i32) -> (i32, i32) {
    %c0_i32 = arith.constant 0 : i32
    %c0_i32_0 = arith.constant 0 : i32
    return %arg0, %c0_i32 : i32, i32
  }
  func.func @transform_1(%arg0: i32) -> (i32, i32) {
    %c0_i32 = arith.constant 0 : i32
    %c0_i32_0 = arith.constant 0 : i32
    return %arg0, %c0_i32 : i32, i32
  }
  func.func @transform_2(%arg0: i32) -> (i32, i32) {
    %c0_i32 = arith.constant 0 : i32
    %c0_i32_0 = arith.constant 0 : i32
    %c0_i32_1 = arith.constant 0 : i32
    return %c0_i32, %c0_i32_0 : i32, i32
  }
  func.func @transform_3(%arg0: i32) -> (i32, i32) {
    %c0_i32 = arith.constant 0 : i32
    %c0_i32_0 = arith.constant 0 : i32
    %c0_i32_1 = arith.constant 0 : i32
    return %c0_i32, %c0_i32_0 : i32, i32
  }
  func.func @transform_4(%arg0: i32) -> (i32, i32) {
    %c0_i32 = arith.constant 0 : i32
    %c0_i32_0 = arith.constant 0 : i32
    %c0_i32_1 = arith.constant 0 : i32
    return %c0_i32, %c0_i32_0 : i32, i32
  }
  func.func @transform_5(%arg0: i32) -> (i32, i32) {
    %c0_i32 = arith.constant 0 : i32
    %c0_i32_0 = arith.constant 0 : i32
    %c0_i32_1 = arith.constant 0 : i32
    return %c0_i32, %c0_i32_0 : i32, i32
  }
  func.func @transform_6(%arg0: i32) -> (i32, i32) {
    %c0_i32 = arith.constant 0 : i32
    %c0_i32_0 = arith.constant 0 : i32
    %c0_i32_1 = arith.constant 0 : i32
    return %c0_i32, %c0_i32_0 : i32, i32
  }
  func.func @transform_7(%arg0: i32) -> (i32, i32) {
    %c0_i32 = arith.constant 0 : i32
    %c0_i32_0 = arith.constant 0 : i32
    return %arg0, %c0_i32 : i32, i32
  }
}

</mosaic_0001>

<llo_original>
// kernel: tpu_custom_call.1
$region0: #{tpu_custom_call.1}
  #allocation0 [shape = 'u32[]', space=smem, size = 0x4, offset = 0x4, fixed_abs, tag = 'smem constant byte address 0x4 - core index']
  #allocation1 [shape = 'u32[144,128]{1,0:T(1,128)}', space=vmem, size = 0x12000, scoped, tag = 'internal scratch']
  %s0 = inlined_call_operand.vmem [shape: bf16[8,32], index: 0, kind: input, shape index: {}]
  %s1 = inlined_call_operand.vmem [shape: bf16[8,32], index: 1, kind: input, shape index: {}]
  %s2 = inlined_call_operand.vmem [shape: bf16[32,32], index: 2, kind: input, shape index: {}]
  %s3 = inlined_call_operand.hbm [shape: bf16[32,32], index: 3, kind: input, shape index: {}]
  %s4 = inlined_call_operand.vmem [shape: bf16[32,8], index: 4, kind: input, shape index: {}]
  %s5 = inlined_call_operand.vmem [shape: f32[1,32], index: 5, kind: input, shape index: {}]
  %s6 = inlined_call_operand.vmem [shape: f32[1,8], index: 6, kind: input, shape index: {}]
  %s7 = inlined_call_operand.hbm [shape: f32[8,8], index: 7, kind: output, shape index: {}]
  %s8 = sld [smem:[#allocation0]]
  $region42: #{tpu_custom_call.1} parent=0
    _
  %s10 = ssub.s32 1, %s8
  %s11 = scalar_select 0, %s10, %s8
  $region1: #{tpu_custom_call.1} parent=0
    #allocation2 [shape = 'u8[8192]{0}', space=vmem, size = 0x2000, scoped, tag = 'input window, operand 3, single buffered']
    #allocation3 [shape = 's32[1]{0}', space=sflag, size = 0x4, scoped, tag = 'scoped memory for tpu_custom_call.1']
    #allocation4 [shape = 's32[1]{0}', space=sflag, size = 0x4, scoped, tag = 'scoped memory for tpu_custom_call.1']
    #allocation5 [shape = 'u8[4096]{0}', space=vmem, size = 0x1000, scoped, tag = 'output window, operand 0, single buffered']
    %12 = vsyncpa [#allocation3], 0
    %13 = vsyncpa [#allocation4], 0
    // Predicated region
    $region2: #{tpu_custom_call.1} parent=1 // pred_check
      _
    $region3: #{tpu_custom_call.1} parent=1 // pred_check_branch
      %15 = sbr.rel (0) target = $region5
    $region4: #{tpu_custom_call.1} parent=1 // pred_region
      _
    $region5: #{tpu_custom_call.1} parent=1 // pred_fallthru
      _
    // Predicated region
    $region6: #{tpu_custom_call.1} parent=1 // pred_check
      _
    $region7: #{tpu_custom_call.1} parent=1 // pred_check_branch
      %17 = sbr.rel (0) target = $region9
    $region8: #{tpu_custom_call.1} parent=1 // pred_region
      _
    $region9: #{tpu_custom_call.1} parent=1 // pred_fallthru
      _
    // Predicated region
    $region10: #{tpu_custom_call.1} parent=1 // pred_check
      _
    $region11: #{tpu_custom_call.1} parent=1 // pred_check_branch
      %19 = sbr.rel (0) target = $region13
    $region12: #{tpu_custom_call.1} parent=1 // pred_region
      _
    $region13: #{tpu_custom_call.1} parent=1 // pred_fallthru
      _
    // Predicated region
    $region14: #{tpu_custom_call.1} parent=1 // pred_check
      _
    $region15: #{tpu_custom_call.1} parent=1 // pred_check_branch
      %21 = sbr.rel (0) target = $region17
    $region16: #{tpu_custom_call.1} parent=1 // pred_region
      %s23 = ssub.s32 256, 256
      %24 = vsyncadd [#allocation3], %s23
      %s25 = sshll.u32 [#allocation2], 4
      %s26 = int_to_ptr.vmem [resolvable:$true] %s25
      %31 = dma.hbm_to_vmem [thread:$0]  %s3, 256, %s26, [#allocation3], 64, 64, 4
    $region17: #{tpu_custom_call.1} parent=1 // pred_fallthru
      _
    // Predicated region
    $region18: #{tpu_custom_call.1} parent=1 // pred_check
      _
    $region19: #{tpu_custom_call.1} parent=1 // pred_check_branch
      %33 = sbr.rel (0) target = $region21
    $region20: #{tpu_custom_call.1} parent=1 // pred_region
      _
    $region21: #{tpu_custom_call.1} parent=1 // pred_fallthru
      _
    // Predicated region
    $region22: #{tpu_custom_call.1} parent=1 // pred_check
      _
    $region23: #{tpu_custom_call.1} parent=1 // pred_check_branch
      %35 = sbr.rel (0) target = $region25
    $region24: #{tpu_custom_call.1} parent=1 // pred_region
      _
    $region25: #{tpu_custom_call.1} parent=1 // pred_fallthru
      _
    // Predicated region
    $region26: #{tpu_custom_call.1} parent=1 // pred_check
      _
    $region27: #{tpu_custom_call.1} parent=1 // pred_check_branch
      %37 = sbr.rel (0) target = $region29
    $region28: #{tpu_custom_call.1} parent=1 // pred_region
      _
    $region29: #{tpu_custom_call.1} parent=1 // pred_fallthru
      _
    // Predicated region
    $region30: #{tpu_custom_call.1} parent=1 // pred_check
      _
    $region31: #{tpu_custom_call.1} parent=1 // pred_check_branch
      %39 = sbr.rel (0) target = $region33
    $region32: #{tpu_custom_call.1} parent=1 // pred_region
      %40 = dma.done [#allocation3], 256
    $region33: #{tpu_custom_call.1} parent=1 // pred_fallthru
      _
    %v42 = vld [vmem:[%s0] sm:$0xf]
    %v43 = vld [vmem:[%s1] sm:$0xf]
    %v44 = vmul.bf16 %v42, %v43
    %v45 = vsub.bf16 %v42, %v43
    %v46 = vand.u32 2147450879, %v45
    %v47 = vld [vmem:[%s2] sm:$0xf]
    %v48 = vld [vmem:[%s2 + $0x4] sm:$0xf]
    %v49 = vld [vmem:[%s2 + $0x8] sm:$0xf]
    %v50 = vld [vmem:[%s2 + $0xc] sm:$0xf]
    %v51 = vld [vmem:[#allocation2] sm:$0xf]
    %v52 = vld [vmem:[#allocation2 + $0x4] sm:$0xf]
    %v53 = vld [vmem:[#allocation2 + $0x8] sm:$0xf]
    %v54 = vld [vmem:[#allocation2 + $0xc] sm:$0xf]
    %v59 = vunpack.c.l.b16 %v51
    %v60 = vunpack.c.l.b16 %v52
    %v61 = vunpack.c.l.b16 %v53
    %v62 = vunpack.c.l.b16 %v54
    %v63 = vpack.c.b16 %v60, %v59
    %v64 = vpack.c.b16 %v62, %v61
    %vm67 = vcmask 261120
    %v69 = vsel %vm67, %v46, 0
    %71 = vmatprep.subr.bf16.mxu0 0
    %72 = vmatpush1.bf16.msra.mxu0 %v63
    %73 = vmatprep.subr.bf16.mxu0 0
    %74 = vmatpush1.bf16.msra.mxu0 %v64
    %75 = vmatprep.subr.bf16.mxu0 0
    %76 = vmatpush1.bf16.msra.mxu0 0
    %77 = vmatprep.subr.bf16.mxu0 0
    %78 = vmatpush1.bf16.msra.mxu0 0
    %79 = vmatprep.subr.bf16.mxu0 0
    %80 = vmatpush1.bf16.msra.mxu0 0
    %81 = vmatprep.subr.bf16.mxu0 0
    %82 = vmatpush1.bf16.msra.mxu0 0
    %83 = vmatprep.subr.bf16.mxu0 0
    %84 = vmatpush1.bf16.msra.mxu0 0
    %85 = vmatprep.subr.bf16.mxu0 0
    %86 = vmatpush1.bf16.msra.mxu0 0
    %87 = vmatprep.subr.bf16.mxu0 0
    %88 = vmatpush1.bf16.msra.mxu0 0
    %89 = vmatprep.subr.bf16.mxu0 0
    %90 = vmatpush1.bf16.msra.mxu0 0
    %91 = vmatprep.subr.bf16.mxu0 0
    %92 = vmatpush1.bf16.msra.mxu0 0
    %93 = vmatprep.subr.bf16.mxu0 0
    %94 = vmatpush1.bf16.msra.mxu0 0
    %95 = vmatprep.subr.bf16.mxu0 0
    %96 = vmatpush1.bf16.msra.mxu0 0
    %97 = vmatprep.subr.bf16.mxu0 0
    %98 = vmatpush1.bf16.msra.mxu0 0
    %99 = vmatprep.subr.bf16.mxu0 0
    %100 = vmatpush1.bf16.msra.mxu0 0
    %101 = vmatprep.subr.bf16.mxu0 0
    %102 = vmatpush1.bf16.msra.mxu0 0
    %103 = vmatprep.mubr.bf16.mxu0 0
    %104 = vmatmul.mubr.bf16.gmra.mrb[0].mxu0 %v69
    %v105 = vpop.f32.mrb[0].mxu0
    %v106 = vadd.f32 0.0, %v105
    %v107 = vpop.f32.mrb[0].mxu0
    %v108 = vpop.f32.mrb[0].mxu0
    %v109 = vpop.f32.mrb[0].mxu0
    %110 = vdwg.mxu0
    %v115 = vunpack.c.l.b16 %v47
    %v116 = vunpack.c.l.b16 %v48
    %v117 = vunpack.c.l.b16 %v49
    %v118 = vunpack.c.l.b16 %v50
    %v119 = vpack.c.b16 %v116, %v115
    %v120 = vpack.c.b16 %v118, %v117
    %v124 = vsel %vm67, %v44, 0
    %126 = vmatprep.subr.bf16.mxu0 0
    %127 = vmatpush1.bf16.msra.mxu0 %v119
    %128 = vmatprep.subr.bf16.mxu0 0
    %129 = vmatpush1.bf16.msra.mxu0 %v120
    %130 = vmatprep.subr.bf16.mxu0 0
    %131 = vmatpush1.bf16.msra.mxu0 0
    %132 = vmatprep.subr.bf16.mxu0 0
    %133 = vmatpush1.bf16.msra.mxu0 0
    %134 = vmatprep.subr.bf16.mxu0 0
    %135 = vmatpush1.bf16.msra.mxu0 0
    %136 = vmatprep.subr.bf16.mxu0 0
    %137 = vmatpush1.bf16.msra.mxu0 0
    %138 = vmatprep.subr.bf16.mxu0 0
    %139 = vmatpush1.bf16.msra.mxu0 0
    %140 = vmatprep.subr.bf16.mxu0 0
    %141 = vmatpush1.bf16.msra.mxu0 0
    %142 = vmatprep.subr.bf16.mxu0 0
    %143 = vmatpush1.bf16.msra.mxu0 0
    %144 = vmatprep.subr.bf16.mxu0 0
    %145 = vmatpush1.bf16.msra.mxu0 0
    %146 = vmatprep.subr.bf16.mxu0 0
    %147 = vmatpush1.bf16.msra.mxu0 0
    %148 = vmatprep.subr.bf16.mxu0 0
    %149 = vmatpush1.bf16.msra.mxu0 0
    %150 = vmatprep.subr.bf16.mxu0 0
    %151 = vmatpush1.bf16.msra.mxu0 0
    %152 = vmatprep.subr.bf16.mxu0 0
    %153 = vmatpush1.bf16.msra.mxu0 0
    %154 = vmatprep.subr.bf16.mxu0 0
    %155 = vmatpush1.bf16.msra.mxu0 0
    %156 = vmatprep.subr.bf16.mxu0 0
    %157 = vmatpush1.bf16.msra.mxu0 0
    %158 = vmatprep.mubr.bf16.mxu0 0
    %159 = vmatmul.mubr.bf16.gmra.mrb[0].mxu0 %v124
    %v160 = vpop.f32.mrb[0].mxu0
    %v161 = vadd.f32 %v106, %v160
    %v162 = vpop.f32.mrb[0].mxu0
    %v163 = vpop.f32.mrb[0].mxu0
    %v164 = vpop.f32.mrb[0].mxu0
    %165 = vdwg.mxu0
    %v166 = vld [vmem:[%s5] sm:$0x1]
    %v168 = vlaneseq
    %v169 = vshrl.u32 %v168, 7
    %v170 = vsub.s32 0, %v169
    %v171 = vrot.slane %v166, %v170
    %v173 = vadd.f32 %v161, %v171
    %v174 = vxor.u32 %v173, 2147483648
    %v175 = vmul.f32 %v174, 1.442695
    %v176 = vpow.pop %v175
    %v177 = vadd.f32 %v176, 1.0
    %v178 = vrcp.pop %v177
    %v179 = vmul.f32 1.0, %v178
    %v180 = vpack.c.bf16 %v179, %v179
    %v181 = vld [vmem:[%s4] sm:$0xf]
    %v182 = vld [vmem:[%s4 + $0x4] sm:$0xf]
    %v183 = vld [vmem:[%s4 + $0x8] sm:$0xf]
    %v184 = vld [vmem:[%s4 + $0xc] sm:$0xf]
    %v185 = vld [vmem:[%s6] sm:$0x1]
    %v187 = vlaneseq
    %v188 = vshrl.u32 %v187, 7
    %v189 = vsub.s32 0, %v188
    %v190 = vrot.slane %v185, %v189
    %v196 = vunpack.c.l.b16 %v181
    %v197 = vunpack.c.l.b16 %v182
    %v198 = vunpack.c.l.b16 %v183
    %v199 = vunpack.c.l.b16 %v184
    %v200 = vpack.c.b16 %v197, %v196
    %v201 = vpack.c.b16 %v199, %v198
    %v205 = vsel %vm67, %v180, 0
    %207 = vmatprep.subr.bf16.mxu0 0
    %208 = vmatpush1.bf16.msra.mxu0 %v200
    %209 = vmatprep.subr.bf16.mxu0 0
    %210 = vmatpush1.bf16.msra.mxu0 %v201
    %211 = vmatprep.subr.bf16.mxu0 0
    %212 = vmatpush1.bf16.msra.mxu0 0
    %213 = vmatprep.subr.bf16.mxu0 0
    %214 = vmatpush1.bf16.msra.mxu0 0
    %215 = vmatprep.subr.bf16.mxu0 0
    %216 = vmatpush1.bf16.msra.mxu0 0
    %217 = vmatprep.subr.bf16.mxu0 0
    %218 = vmatpush1.bf16.msra.mxu0 0
    %219 = vmatprep.subr.bf16.mxu0 0
    %220 = vmatpush1.bf16.msra.mxu0 0
    %221 = vmatprep.subr.bf16.mxu0 0
    %222 = vmatpush1.bf16.msra.mxu0 0
    %223 = vmatprep.subr.bf16.mxu0 0
    %224 = vmatpush1.bf16.msra.mxu0 0
    %225 = vmatprep.subr.bf16.mxu0 0
    %226 = vmatpush1.bf16.msra.mxu0 0
    %227 = vmatprep.subr.bf16.mxu0 0
    %228 = vmatpush1.bf16.msra.mxu0 0
    %229 = vmatprep.subr.bf16.mxu0 0
    %230 = vmatpush1.bf16.msra.mxu0 0
    %231 = vmatprep.subr.bf16.mxu0 0
    %232 = vmatpush1.bf16.msra.mxu0 0
    %233 = vmatprep.subr.bf16.mxu0 0
    %234 = vmatpush1.bf16.msra.mxu0 0
    %235 = vmatprep.subr.bf16.mxu0 0
    %236 = vmatpush1.bf16.msra.mxu0 0
    %237 = vmatprep.subr.bf16.mxu0 0
    %238 = vmatpush1.bf16.msra.mxu0 0
    %239 = vmatprep.mubr.bf16.mxu0 0
    %240 = vmatmul.mubr.bf16.gmra.mrb[0].mxu0 %v205
    %v241 = vpop.f32.mrb[0].mxu0
    %v242 = vadd.f32 %v190, %v241
    %v243 = vpop.f32.mrb[0].mxu0
    %v244 = vpop.f32.mrb[0].mxu0
    %v245 = vpop.f32.mrb[0].mxu0
    %246 = vdwg.mxu0
    %vm247 = vcmask 64512
    %v248 = vsel %vm247, %v242, -inf
    %249 = vmax.xlane.f32.xlu0 %v248
    %v250 = vpop.xlane.xlu0 %249
    %v251 = vsub.f32 %v242, %v250
    %v252 = vmul.f32 %v251, 1.442695
    %v253 = vpow.pop %v252
    %v254 = vsel %vm247, %v253, 0.0
    %255 = vadd.xlane.f32.xlu0 %v254
    %v256 = vpop.xlane.xlu0 %255
    %v257 = vlog2.pop %v256
    %v258 = vmul.f32 %v257, 0.6931472
    %v259 = vsub.f32 %v251, %v258
    %260 = vst.msk [vmem:[#allocation5] sm:$0xff] %vm247, %v259
    // Predicated region
    $region34: #{tpu_custom_call.1} parent=1 // pred_check
      _
    $region35: #{tpu_custom_call.1} parent=1 // pred_check_branch
      %262 = sbr.rel (0) target = $region37
    $region36: #{tpu_custom_call.1} parent=1 // pred_region
      %s264 = ssub.s32 128, 128
      %265 = vsyncadd [#allocation4], %s264
      %s267 = sshll.u32 [#allocation5], 4
      %s268 = int_to_ptr.vmem [resolvable:$true] %s267
      %270 = dma.vmem_to_hbm [thread:$0]  %s268, 128, %s7, [#allocation4]
    $region37: #{tpu_custom_call.1} parent=1 // pred_fallthru
      _
    // Predicated region
    $region38: #{tpu_custom_call.1} parent=1 // pred_check
      _
    $region39: #{tpu_custom_call.1} parent=1 // pred_check_branch
      %272 = sbr.rel (0) target = $region41
    $region40: #{tpu_custom_call.1} parent=1 // pred_region
      %273 = dma.done [#allocation4], 128
    $region41: #{tpu_custom_call.1} parent=1 // pred_fallthru
      _
    %274 = vsyncpa [#allocation3], 1
    %275 = vsyncpa [#allocation4], 1

</llo_original>
